<compile_context>
chip_gen: v7x
topology: tpu7x:2x2x1
jax: 0.10.0
libtpu: 0.0.40
codegen_flags: <defaults>
</compile_context>

<pallas_src>
import jax
import jax.numpy as jnp
import numpy as np
from jax.experimental import pallas as pl
from jax.experimental.pallas import tpu as pltpu

BN_EPS = 1e-5


def stem_fused_kernel(x_ref, w_ref, gamma_ref, beta_ref, o_ref,
                      conv_sc, scale_sc, shift_sc):
    """Fused conv3x3 + BatchNorm(train) + ReLU.

    x_ref:     (1, 27, H*W) bf16  -- im2col patches for the current image (k = kh,kw,ci)
    w_ref:     (Cout, 27)   bf16  -- folded conv weights (resident across the grid)
    gamma/beta (Cout, 1)    f32   -- BN affine params (resident)
    o_ref:     (1, Cout, H*W) f32 -- NCHW output block (lane-dense on H*W)
    conv_sc:   (N, Cout, H*W) f32 VMEM scratch (persists across grid steps)
    scale_sc / shift_sc: (Cout, 1) f32 VMEM scratch (folded BN scale / shift)
    """
    p = pl.program_id(0)            # phase: 0 = conv + stats, 1 = normalize + ReLU
    n = pl.program_id(1)            # image index
    n_imgs = pl.num_programs(1)

    @pl.when(p == 0)
    def _():
        # Single MXU contraction: (Cout, 27) @ (27, H*W) -> (Cout, H*W) f32.
        conv = jnp.dot(w_ref[...], x_ref[0], preferred_element_type=jnp.float32)
        conv_sc[n] = conv

        # Phase boundary: fold BN batch statistics into per-channel scale/shift.
        @pl.when(n == n_imgs - 1)
        def _():
            conv_all = conv_sc[...]                               # (N, Cout, HW) f32
            cnt = conv_all.shape[0] * conv_all.shape[2]
            mean = jnp.sum(jnp.sum(conv_all, axis=0), axis=1, keepdims=True) / cnt
            d = conv_all - mean                                   # centered (stable var)
            var = jnp.sum(jnp.sum(d * d, axis=0), axis=1, keepdims=True) / cnt
            inv_std = jax.lax.rsqrt(var + BN_EPS)                 # (Cout, 1)
            scale = gamma_ref[...] * inv_std                      # (Cout, 1)
            scale_sc[...] = scale
            shift_sc[...] = beta_ref[...] - mean * scale

    @pl.when(p == 1)
    def _():
        # Single FMA epilogue + ReLU from the cached conv; lane-dense f32 store.
        y = conv_sc[n] * scale_sc[...] + shift_sc[...]            # (Cout, HW)
        o_ref[0] = jnp.maximum(y, 0.0).astype(o_ref.dtype)


def resnet_stem_pallas(x_nchw, weight_oihw, gamma, beta):
    """x_nchw: (N, Cin, H, W). weight_oihw: (Cout, Cin, 3, 3). Returns (N, Cout, H, W) f32."""
    N, Cin, H, W = x_nchw.shape
    Cout = weight_oihw.shape[0]
    HW = H * W
    K = 9 * Cin

    # ---- wrapper glue (tiny, bf16, no transposes): pad + fold all 9 taps into channels
    xb = x_nchw.astype(jnp.bfloat16)
    xp = jnp.pad(xb, ((0, 0), (0, 0), (1, 1), (1, 1)))                  # (N, Cin, H+2, W+2)
    # fold kw taps: channel index = kw*Cin + ci
    x3 = jnp.concatenate([xp[:, :, :, kw:kw + W] for kw in range(3)], axis=1)
    x3 = x3.reshape(N, 3 * Cin, (H + 2) * W)                            # contiguous reshape
    # fold kh taps: each kh band is the contiguous lane slice [kh*W, kh*W + H*W)
    x9 = jnp.concatenate([x3[:, :, kh * W: kh * W + HW] for kh in range(3)], axis=1)
    # x9: (N, 9*Cin, H*W) with k = kh*3*Cin + kw*Cin + ci

    # weight (Cout, Cin, 3, 3) -> (Cout, kh, kw, ci) -> (Cout, 27) bf16 MXU operand
    w_mat = jnp.transpose(weight_oihw, (0, 2, 3, 1)).reshape(Cout, K).astype(jnp.bfloat16)

    gamma2 = gamma.astype(jnp.float32).reshape(Cout, 1)
    beta2 = beta.astype(jnp.float32).reshape(Cout, 1)

    out = pl.pallas_call(
        stem_fused_kernel,
        out_shape=jax.ShapeDtypeStruct((N, Cout, HW), jnp.float32),
        grid=(2, N),                                  # (phase, image), phase slowest
        in_specs=[
            # per-image patches; parked on the last block during phase 1 (no re-DMA)
            pl.BlockSpec((1, K, HW), lambda p, n: ((1 - p) * n + p * (N - 1), 0, 0)),
            pl.BlockSpec((Cout, K), lambda p, n: (0, 0)),     # weights resident
            pl.BlockSpec((Cout, 1), lambda p, n: (0, 0)),     # gamma resident
            pl.BlockSpec((Cout, 1), lambda p, n: (0, 0)),     # beta resident
        ],
        # Output buffer stays on block 0 through phase 0 (never written there), then
        # advances with n in phase 1 -> exactly one lane-dense writeback per image.
        out_specs=pl.BlockSpec((1, Cout, HW), lambda p, n: (p * n, 0, 0)),
        scratch_shapes=[
            pltpu.VMEM((N, Cout, HW), jnp.float32),   # cached conv for the whole batch
            pltpu.VMEM((Cout, 1), jnp.float32),       # folded BN scale
            pltpu.VMEM((Cout, 1), jnp.float32),       # folded BN shift
        ],
        compiler_params=pltpu.CompilerParams(
            dimension_semantics=("arbitrary", "arbitrary")),
    )(x9, w_mat, gamma2, beta2)

    # Output is already NCHW -> contiguous reshape only, no transpose.
    return out.reshape(N, Cout, H, W)


def resnet_stem_ref(x_nchw, weight_oihw, gamma, beta):
    """Pure-JAX reference (same semantics as the PyTorch module in training mode)."""
    conv = jax.lax.conv_general_dilated(
        x_nchw.astype(jnp.float32), weight_oihw.astype(jnp.float32),
        window_strides=(1, 1), padding=((1, 1), (1, 1)),
        dimension_numbers=("NCHW", "OIHW", "NCHW"))
    mean = jnp.mean(conv, axis=(0, 2, 3), keepdims=True)
    var = jnp.mean((conv - mean) ** 2, axis=(0, 2, 3), keepdims=True)
    y = (conv - mean) * jax.lax.rsqrt(var + BN_EPS)
    y = y * gamma.reshape(1, -1, 1, 1) + beta.reshape(1, -1, 1, 1)
    return jnp.maximum(y, 0.0)


if __name__ == "__main__":
    # Small shapes consistent with the module: batch=2, Cin=3, spatial=16, Cout=64.
    N, Cin, H, W, Cout = 2, 3, 16, 16, 64

    key = jax.random.PRNGKey(0)
    kx, kw, kg, kb = jax.random.split(key, 4)
    x = jax.random.normal(kx, (N, Cin, H, W), dtype=jnp.float32)
    weight = jax.random.normal(kw, (Cout, Cin, 3, 3), dtype=jnp.float32) * 0.1
    gamma = 1.0 + 0.1 * jax.random.normal(kg, (Cout,), dtype=jnp.float32)
    beta = 0.1 * jax.random.normal(kb, (Cout,), dtype=jnp.float32)

    out = jax.block_until_ready(resnet_stem_pallas(x, weight, gamma, beta))
    assert out.shape == (N, Cout, H, W), out.shape

    # The kernel feeds the MXU bf16 operands by design; compare against the reference
    # run on identically bf16-rounded conv operands so the check isolates kernel
    # correctness (BN / epilogue math is f32 in both paths).
    xq = x.astype(jnp.bfloat16).astype(jnp.float32)
    wq = weight.astype(jnp.bfloat16).astype(jnp.float32)
    ref = jax.block_until_ready(resnet_stem_ref(xq, wq, gamma, beta))
    np.testing.assert_allclose(np.asarray(out), np.asarray(ref), atol=1e-4, rtol=1e-4)

    print("KERNEL_OK")
</pallas_src>

<mosaic_0001>
module attributes {stable_mosaic.version = 11 : i64} {
  func.func @stem_fused_kernel(%arg0: i32, %arg1: i32, %arg2: memref<1x27x256xbf16, #tpu.memory_space<vmem>>, %arg3: memref<64x27xbf16, #tpu.memory_space<vmem>>, %arg4: memref<64x1xf32, #tpu.memory_space<vmem>>, %arg5: memref<64x1xf32, #tpu.memory_space<vmem>>, %arg6: memref<1x64x256xf32, #tpu.memory_space<vmem>>, %arg7: memref<2x64x256xf32, #tpu.memory_space<vmem>>, %arg8: memref<64x1xf32, #tpu.memory_space<vmem>>, %arg9: memref<64x1xf32, #tpu.memory_space<vmem>>) attributes {dimension_semantics = [#tpu.dimension_semantics<arbitrary>, #tpu.dimension_semantics<arbitrary>], iteration_bounds = array<i64: 2, 2>, scalar_prefetch = 0 : i64, scratch_operands = 3 : i64, tpu.core_type = #tpu.core_type<tc>, window_params = [{transform_indices = @transform_0, window_bounds = array<i64: 1, 27, 256>}, {pipeline_mode = #tpu.pipeline_mode<synchronous>, transform_indices = @transform_1, window_bounds = array<i64: 64, 27>}, {pipeline_mode = #tpu.pipeline_mode<synchronous>, transform_indices = @transform_2, window_bounds = array<i64: 64, 1>}, {pipeline_mode = #tpu.pipeline_mode<synchronous>, transform_indices = @transform_3, window_bounds = array<i64: 64, 1>}, {transform_indices = @transform_4, window_bounds = array<i64: 1, 64, 256>}]} {
    %c0_i32 = arith.constant 0 : i32
    %0 = arith.cmpi eq, %arg0, %c0_i32 : i32
    %1 = arith.extui %0 : i1 to i32
    %c0_i32_0 = arith.constant 0 : i32
    %2 = arith.cmpi ne, %1, %c0_i32_0 : i32
    scf.if %2 {
      %c0 = arith.constant 0 : index
      %c0_2 = arith.constant 0 : index
      %6 = vector.load %arg3[%c0, %c0_2] : memref<64x27xbf16, #tpu.memory_space<vmem>>, vector<64x27xbf16>
      %c0_3 = arith.constant 0 : index
      %c0_4 = arith.constant 0 : index
      %c0_5 = arith.constant 0 : index
      %7 = vector.load %arg2[%c0_3, %c0_4, %c0_5] : memref<1x27x256xbf16, #tpu.memory_space<vmem>>, vector<1x27x256xbf16>
      %8 = vector.shape_cast %7 : vector<1x27x256xbf16> to vector<27x256xbf16>
      %cst = arith.constant dense<0.000000e+00> : vector<64x256xf32>
      %9 = tpu.matmul %6, %8, %cst {dimension_numbers = #tpu.dot_dimension_numbers<[1], [0], [0], [1], [0, 0, 1, 1], [], []>} : vector<64x27xbf16>, vector<27x256xbf16>, vector<64x256xf32> -> vector<64x256xf32>
      %10 = arith.index_cast %arg1 : i32 to index
      %c0_6 = arith.constant 0 : index
      %c0_7 = arith.constant 0 : index
      %11 = vector.load %arg7[%10, %c0_6, %c0_7] : memref<2x64x256xf32, #tpu.memory_space<vmem>>, vector<1x64x256xf32>
      %12 = vector.shape_cast %11 : vector<1x64x256xf32> to vector<64x256xf32>
      %13 = vector.shape_cast %9 : vector<64x256xf32> to vector<1x64x256xf32>
      tpu.vector_store %arg7[%10, %c0_6, %c0_7], %13 {strides = array<i32>} : memref<2x64x256xf32, #tpu.memory_space<vmem>>, vector<1x64x256xf32>,
      %c1_i32_8 = arith.constant 1 : i32
      %14 = arith.cmpi eq, %arg1, %c1_i32_8 : i32
      %15 = arith.extui %14 : i1 to i32
      %c0_i32_9 = arith.constant 0 : i32
      %16 = arith.cmpi ne, %15, %c0_i32_9 : i32
      scf.if %16 {
        %c0_10 = arith.constant 0 : index
        %c0_11 = arith.constant 0 : index
        %c0_12 = arith.constant 0 : index
        %17 = vector.load %arg7[%c0_10, %c0_11, %c0_12] : memref<2x64x256xf32, #tpu.memory_space<vmem>>, vector<2x64x256xf32>
        %cst_13 = arith.constant dense<0.000000e+00> : vector<64x256xf32>
        %18 = vector.multi_reduction <add>, %17, %cst_13 [0] : vector<2x64x256xf32> to vector<64x256xf32>
        %cst_14 = arith.constant dense<0.000000e+00> : vector<64xf32>
        %19 = vector.multi_reduction <add>, %18, %cst_14 [1] : vector<64x256xf32> to vector<64xf32>
        %20 = vector.shape_cast %19 : vector<64xf32> to vector<64x1xf32>
        %cst_15 = arith.constant 5.120000e+02 : f32
        %21 = vector.broadcast %cst_15 : f32 to vector<64x1xf32>
        %22 = arith.divf %20, %21 : vector<64x1xf32>
        %23 = vector.shape_cast %22 : vector<64x1xf32> to vector<1x64x1xf32>
        %24 = vector.broadcast %23 : vector<1x64x1xf32> to vector<2x64x256xf32>
        %25 = arith.subf %17, %24 : vector<2x64x256xf32>
        %26 = arith.mulf %25, %25 : vector<2x64x256xf32>
        %cst_16 = arith.constant dense<0.000000e+00> : vector<64x256xf32>
        %27 = vector.multi_reduction <add>, %26, %cst_16 [0] : vector<2x64x256xf32> to vector<64x256xf32>
        %cst_17 = arith.constant dense<0.000000e+00> : vector<64xf32>
        %28 = vector.multi_reduction <add>, %27, %cst_17 [1] : vector<64x256xf32> to vector<64xf32>
        %29 = vector.shape_cast %28 : vector<64xf32> to vector<64x1xf32>
        %cst_18 = arith.constant 5.120000e+02 : f32
        %30 = vector.broadcast %cst_18 : f32 to vector<64x1xf32>
        %31 = arith.divf %29, %30 : vector<64x1xf32>
        %cst_19 = arith.constant 9.99999974E-6 : f32
        %32 = vector.broadcast %cst_19 : f32 to vector<64x1xf32>
        %33 = arith.addf %31, %32 : vector<64x1xf32>
        %34 = math.rsqrt %33 : vector<64x1xf32>
        %c0_20 = arith.constant 0 : index
        %c0_21 = arith.constant 0 : index
        %35 = vector.load %arg4[%c0_20, %c0_21] : memref<64x1xf32, #tpu.memory_space<vmem>>, vector<64x1xf32>
        %36 = arith.mulf %35, %34 : vector<64x1xf32>
        %c0_22 = arith.constant 0 : index
        %c0_23 = arith.constant 0 : index
        %37 = vector.load %arg8[%c0_22, %c0_23] : memref<64x1xf32, #tpu.memory_space<vmem>>, vector<64x1xf32>
        tpu.vector_store %arg8[%c0_22, %c0_23], %36 {strides = array<i32>} : memref<64x1xf32, #tpu.memory_space<vmem>>, vector<64x1xf32>,
        %c0_24 = arith.constant 0 : index
        %c0_25 = arith.constant 0 : index
        %38 = vector.load %arg5[%c0_24, %c0_25] : memref<64x1xf32, #tpu.memory_space<vmem>>, vector<64x1xf32>
        %39 = arith.mulf %22, %36 : vector<64x1xf32>
        %40 = arith.subf %38, %39 : vector<64x1xf32>
        %c0_26 = arith.constant 0 : index
        %c0_27 = arith.constant 0 : index
        %41 = vector.load %arg9[%c0_26, %c0_27] : memref<64x1xf32, #tpu.memory_space<vmem>>, vector<64x1xf32>
        tpu.vector_store %arg9[%c0_26, %c0_27], %40 {strides = array<i32>} : memref<64x1xf32, #tpu.memory_space<vmem>>, vector<64x1xf32>,
      } else {
      }
    } else {
    }
    %c1_i32 = arith.constant 1 : i32
    %3 = arith.cmpi eq, %arg0, %c1_i32 : i32
    %4 = arith.extui %3 : i1 to i32
    %c0_i32_1 = arith.constant 0 : i32
    %5 = arith.cmpi ne, %4, %c0_i32_1 : i32
    scf.if %5 {
      %6 = arith.index_cast %arg1 : i32 to index
      %c0 = arith.constant 0 : index
      %c0_2 = arith.constant 0 : index
      %7 = vector.load %arg7[%6, %c0, %c0_2] : memref<2x64x256xf32, #tpu.memory_space<vmem>>, vector<1x64x256xf32>
      %8 = vector.shape_cast %7 : vector<1x64x256xf32> to vector<64x256xf32>
      %c0_3 = arith.constant 0 : index
      %c0_4 = arith.constant 0 : index
      %9 = vector.load %arg8[%c0_3, %c0_4] : memref<64x1xf32, #tpu.memory_space<vmem>>, vector<64x1xf32>
      %10 = vector.broadcast %9 : vector<64x1xf32> to vector<64x256xf32>
      %11 = arith.mulf %8, %10 : vector<64x256xf32>
      %c0_5 = arith.constant 0 : index
      %c0_6 = arith.constant 0 : index
      %12 = vector.load %arg9[%c0_5, %c0_6] : memref<64x1xf32, #tpu.memory_space<vmem>>, vector<64x1xf32>
      %13 = vector.broadcast %12 : vector<64x1xf32> to vector<64x256xf32>
      %14 = arith.addf %11, %13 : vector<64x256xf32>
      %cst = arith.constant 0.000000e+00 : f32
      %15 = vector.broadcast %cst : f32 to vector<64x256xf32>
      %16 = arith.maximumf %14, %15 : vector<64x256xf32>
      %c0_7 = arith.constant 0 : index
      %c0_8 = arith.constant 0 : index
      %c0_9 = arith.constant 0 : index
      %17 = vector.load %arg6[%c0_7, %c0_8, %c0_9] : memref<1x64x256xf32, #tpu.memory_space<vmem>>, vector<1x64x256xf32>
      %18 = vector.shape_cast %17 : vector<1x64x256xf32> to vector<64x256xf32>
      %19 = vector.shape_cast %16 : vector<64x256xf32> to vector<1x64x256xf32>
      tpu.vector_store %arg6[%c0_7, %c0_8, %c0_9], %19 {strides = array<i32>} : memref<1x64x256xf32, #tpu.memory_space<vmem>>, vector<1x64x256xf32>,
    } else {
    }
    return
  }
  func.func @transform_0(%arg0: i32, %arg1: i32) -> (i32, i32, i32) {
    %c1_i32 = arith.constant 1 : i32
    %0 = arith.subi %c1_i32, %arg0 : i32
    %1 = arith.muli %0, %arg1 : i32
    %c1_i32_0 = arith.constant 1 : i32
    %2 = arith.muli %arg0, %c1_i32_0 : i32
    %3 = arith.addi %1, %2 : i32
    %c0_i32 = arith.constant 0 : i32
    %c0_i32_1 = arith.constant 0 : i32
    %c0_i32_2 = arith.constant 0 : i32
    return %3, %c0_i32, %c0_i32_1 : i32, i32, i32
  }
  func.func @transform_1(%arg0: i32, %arg1: i32) -> (i32, i32) {
    %c0_i32 = arith.constant 0 : i32
    %c0_i32_0 = arith.constant 0 : i32
    %c0_i32_1 = arith.constant 0 : i32
    return %c0_i32, %c0_i32_0 : i32, i32
  }
  func.func @transform_2(%arg0: i32, %arg1: i32) -> (i32, i32) {
    %c0_i32 = arith.constant 0 : i32
    %c0_i32_0 = arith.constant 0 : i32
    %c0_i32_1 = arith.constant 0 : i32
    return %c0_i32, %c0_i32_0 : i32, i32
  }
  func.func @transform_3(%arg0: i32, %arg1: i32) -> (i32, i32) {
    %c0_i32 = arith.constant 0 : i32
    %c0_i32_0 = arith.constant 0 : i32
    %c0_i32_1 = arith.constant 0 : i32
    return %c0_i32, %c0_i32_0 : i32, i32
  }
  func.func @transform_4(%arg0: i32, %arg1: i32) -> (i32, i32, i32) {
    %0 = arith.muli %arg0, %arg1 : i32
    %c0_i32 = arith.constant 0 : i32
    %c0_i32_0 = arith.constant 0 : i32
    %c0_i32_1 = arith.constant 0 : i32
    return %0, %c0_i32, %c0_i32_0 : i32, i32, i32
  }
}

</mosaic_0001>

<llo_original>
// kernel: tpu_custom_call.1
$region0: #{tpu_custom_call.1}
  #allocation0 [shape = 'u32[]', space=smem, size = 0x4, offset = 0x4, fixed_abs, tag = 'smem constant byte address 0x4 - core index']
  #allocation1 [shape = 'u32[144,128]{1,0:T(1,128)}', space=vmem, size = 0x12000, scoped, tag = 'internal scratch']
  #allocation2 [shape = 'f32[2,64,256]{2,1,0:T(8,128)}', space=vmem, size = 0x20000, scoped, tag = 'scratch operand']
  #allocation3 [shape = 'f32[64,1]{1,0:T(8,128)}', space=vmem, size = 0x8000, scoped, tag = 'scratch operand']
  #allocation4 [shape = 'f32[64,1]{1,0:T(8,128)}', space=vmem, size = 0x8000, scoped, tag = 'scratch operand']
  %s0 = inlined_call_operand.vmem [shape: bf16[2,27,256], index: 0, kind: input, shape index: {}]
  %s1 = inlined_call_operand.vmem [shape: bf16[64,27], index: 1, kind: input, shape index: {}]
  %s2 = inlined_call_operand.vmem [shape: f32[64,1], index: 2, kind: input, shape index: {}]
  %s3 = inlined_call_operand.vmem [shape: f32[64,1], index: 3, kind: input, shape index: {}]
  %s4 = inlined_call_operand.hbm [shape: f32[2,64,256], index: 4, kind: output, shape index: {}]
  %s5 = sld [smem:[#allocation0]]
  $region61: #{tpu_custom_call.1} parent=0
    _
  %s7 = ssub.s32 1, %s5
  %s8 = scalar_select 0, %s7, %s5
  $region1: #{tpu_custom_call.1} parent=0
    #allocation5 [shape = 'u8[131072]{0}', space=vmem, size = 0x20000, scoped, tag = 'output window, operand 0']
    #allocation6 [shape = 's32[2]{0}', space=sflag, size = 0x8, scoped, tag = 'scoped memory for tpu_custom_call.1']
    %9 = vsyncpa [#allocation6], 0
    %s10 = scalar_lea.sflag [#allocation6], 1
    %11 = vsyncpa %s10, 0
    loop: start=0, step=1, limit=6
    $region2: #{tpu_custom_call.1} parent=1 // loop_pre_header
      _
    $region3: #{tpu_custom_call.1} parent=1 // loop_header
      %s13 = sphi 0, %s17
      %p14 = scmp.ge.s32.totalorder %s13, 6
      %s20 = sphi 0, %s32
      %s21 = sphi 0, %s28
      %s22 = sphi 0, %s20
      %s23 = sphi 0, %s21
      %s24 = sphi 0, %s22
      %s25 = sphi 0, %s23
      %s41 = sphi 0, %s43
      %s44 = sphi 0, %s41
      %s45 = sphi 0, %s44
      %s61 = sphi 0, %s45
      %s65 = sphi 0, %s65
      %s67 = sphi 0, %s65
      %s68 = sphi 0, %s67
      %s82 = sphi 0, %s68
      %s86 = sphi 0, %s86
      %s88 = sphi 0, %s86
      %s89 = sphi 0, %s88
      %s103 = sphi 0, %s89
      %s107 = sphi 0, %s107
      %s109 = sphi 0, %s107
      %s110 = sphi 0, %s109
      %s124 = sphi 0, %s110
      %s132 = sphi 0, %s134
      %s135 = sphi 0, %s132
      %s136 = sphi 0, %s135
      %s152 = sphi 0, %s136
    $region4: #{tpu_custom_call.1} parent=1 // loop_header_branch
      %16 = sbr.rel (%p14) target = $region8
    $region5: #{tpu_custom_call.1} parent=1 // loop_body
      %s18 = ssub.s32 %s13, 1
      %s19 = ssub.s32 %s13, 2
      %s26 = sadd.s32 1, %s21
      %p27 = scmp.ge.s32.totalorder %s26, 2
      %s28 = scalar_select %p27, 0, %s26
      %s29 = sadd.s32 1, %s20
      %s30 = scalar_select %p27, %s29, %s20
      %p31 = scmp.ge.s32.totalorder %s30, 2
      %s32 = scalar_select %p31, 0, %s30
      %s33 = ssub.s32 1, %s20
      %s34 = smul.u32 %s33, %s21
      %s35 = sadd.s32 %s34, %s20
      %s36 = ssub.s32 1, %s32
      %s37 = smul.u32 %s36, %s28
      %s38 = sadd.s32 %s37, %s32
      %s39 = ssub.s32 %s35, %s38
      %p40 = scmp.eq.s32.totalorder %s39, 0
      %s42 = sadd.s32 %s41, 1
      %s43 = scalar_select %p40, %s41, %s42
      %p46 = pneg %p40
      %p47 = scmp.eq.s32.totalorder %s13, 3
      %p48 = por %p46, %p47
      %p49 = scmp.ne.s32.totalorder %s41, %s44
      %p50 = scmp.eq.s32.totalorder %s13, 0
      %p51 = por %p49, %p50
      %p52 = scmp.ne.s32.totalorder %s41, %s44
      %p53 = scmp.eq.s32.totalorder %s18, 3
      %p54 = por %p52, %p53
      %p55 = scmp.ne.s32.totalorder %s44, %s45
      %p56 = scmp.eq.s32.totalorder %s18, 0
      %p57 = por %p55, %p56
      %p58 = scmp.ne.s32.totalorder %s44, %s45
      %p59 = scmp.eq.s32.totalorder %s19, 3
      %p60 = por %p58, %p59
      %p62 = scmp.ne.s32.totalorder %s45, %s61
      %p63 = scmp.eq.s32.totalorder %s19, 0
      %p64 = por %p62, %p63
      %s66 = sadd.s32 %s65, 1
      %p69 = scmp.eq.s32.totalorder %s13, 3
      %p70 = scmp.ne.s32.totalorder %s65, %s67
      %p71 = scmp.eq.s32.totalorder %s13, 0
      %p72 = por %p70, %p71
      %p73 = scmp.ne.s32.totalorder %s65, %s67
      %p74 = scmp.eq.s32.totalorder %s18, 3
      %p75 = por %p73, %p74
      %p76 = scmp.ne.s32.totalorder %s67, %s68
      %p77 = scmp.eq.s32.totalorder %s18, 0
      %p78 = por %p76, %p77
      %p79 = scmp.ne.s32.totalorder %s67, %s68
      %p80 = scmp.eq.s32.totalorder %s19, 3
      %p81 = por %p79, %p80
      %p83 = scmp.ne.s32.totalorder %s68, %s82
      %p84 = scmp.eq.s32.totalorder %s19, 0
      %p85 = por %p83, %p84
      %s87 = sadd.s32 %s86, 1
      %p90 = scmp.eq.s32.totalorder %s13, 3
      %p91 = scmp.ne.s32.totalorder %s86, %s88
      %p92 = scmp.eq.s32.totalorder %s13, 0
      %p93 = por %p91, %p92
      %p94 = scmp.ne.s32.totalorder %s86, %s88
      %p95 = scmp.eq.s32.totalorder %s18, 3
      %p96 = por %p94, %p95
      %p97 = scmp.ne.s32.totalorder %s88, %s89
      %p98 = scmp.eq.s32.totalorder %s18, 0
      %p99 = por %p97, %p98
      %p100 = scmp.ne.s32.totalorder %s88, %s89
      %p101 = scmp.eq.s32.totalorder %s19, 3
      %p102 = por %p100, %p101
      %p104 = scmp.ne.s32.totalorder %s89, %s103
      %p105 = scmp.eq.s32.totalorder %s19, 0
      %p106 = por %p104, %p105
      %s108 = sadd.s32 %s107, 1
      %p111 = scmp.eq.s32.totalorder %s13, 3
      %p112 = scmp.ne.s32.totalorder %s107, %s109
      %p113 = scmp.eq.s32.totalorder %s13, 0
      %p114 = por %p112, %p113
      %p115 = scmp.ne.s32.totalorder %s107, %s109
      %p116 = scmp.eq.s32.totalorder %s18, 3
      %p117 = por %p115, %p116
      %p118 = scmp.ne.s32.totalorder %s109, %s110
      %p119 = scmp.eq.s32.totalorder %s18, 0
      %p120 = por %p118, %p119
      %p121 = scmp.ne.s32.totalorder %s109, %s110
      %p122 = scmp.eq.s32.totalorder %s19, 3
      %p123 = por %p121, %p122
      %p125 = scmp.ne.s32.totalorder %s110, %s124
      %p126 = scmp.eq.s32.totalorder %s19, 0
      %p127 = por %p125, %p126
      %s128 = smul.u32 %s20, %s21
      %s129 = smul.u32 %s32, %s28
      %s130 = ssub.s32 %s128, %s129
      %p131 = scmp.eq.s32.totalorder %s130, 0
      %s133 = sadd.s32 %s132, 1
      %s134 = scalar_select %p131, %s132, %s133
      %p137 = pneg %p131
      %p138 = scmp.eq.s32.totalorder %s13, 3
      %p139 = por %p137, %p138
      %p140 = scmp.ne.s32.totalorder %s132, %s135
      %p141 = scmp.eq.s32.totalorder %s13, 0
      %p142 = por %p140, %p141
      %p143 = scmp.ne.s32.totalorder %s132, %s135
      %p144 = scmp.eq.s32.totalorder %s18, 3
      %p145 = por %p143, %p144
      %p146 = scmp.ne.s32.totalorder %s135, %s136
      %p147 = scmp.eq.s32.totalorder %s18, 0
      %p148 = por %p146, %p147
      %p149 = scmp.ne.s32.totalorder %s135, %s136
      %p150 = scmp.eq.s32.totalorder %s19, 3
      %p151 = por %p149, %p150
      %p153 = scmp.ne.s32.totalorder %s136, %s152
      %p154 = scmp.eq.s32.totalorder %s19, 0
      %p155 = por %p153, %p154
      %p156 = scmp.le.s32.totalorder 1, %s13
      %p157 = scmp.lt.s32.totalorder %s13, 5
      %p158 = pnand %p156, %p157
      %p159 = pneg %p158
      // Predicated region
      $region9: #{tpu_custom_call.1} parent=5 // pred_check
        _
      $region10: #{tpu_custom_call.1} parent=5 // pred_check_branch
        %161 = sbr.rel (%p158) target = $region12
      $region11: #{tpu_custom_call.1} parent=5 // pred_region
        %s162 = ssub.s32 %s13, 1
        // Predicated region
        $region13: #{tpu_custom_call.1} parent=11 // pred_check
          %p163 = pneg %p78
        $region14: #{tpu_custom_call.1} parent=11 // pred_check_branch
          %165 = sbr.rel (%p163) target = $region16
        $region15: #{tpu_custom_call.1} parent=11 // pred_region
          _
        $region16: #{tpu_custom_call.1} parent=11 // pred_fallthru
          _
        // Predicated region
        $region17: #{tpu_custom_call.1} parent=11 // pred_check
          %p166 = pneg %p99
        $region18: #{tpu_custom_call.1} parent=11 // pred_check_branch
          %168 = sbr.rel (%p166) target = $region20
        $region19: #{tpu_custom_call.1} parent=11 // pred_region
          _
        $region20: #{tpu_custom_call.1} parent=11 // pred_fallthru
          _
        // Predicated region
        $region21: #{tpu_custom_call.1} parent=11 // pred_check
          %p169 = pneg %p120
        $region22: #{tpu_custom_call.1} parent=11 // pred_check_branch
          %171 = sbr.rel (%p169) target = $region24
        $region23: #{tpu_custom_call.1} parent=11 // pred_region
          _
        $region24: #{tpu_custom_call.1} parent=11 // pred_fallthru
          _
      $region12: #{tpu_custom_call.1} parent=5 // pred_fallthru
        _
      %p172 = scmp.lt.s32.totalorder %s13, 4
      // Predicated region
      $region25: #{tpu_custom_call.1} parent=5 // pred_check
        %p173 = pneg %p172
      $region26: #{tpu_custom_call.1} parent=5 // pred_check_branch
        %175 = sbr.rel (%p173) target = $region28
      $region27: #{tpu_custom_call.1} parent=5 // pred_region
        // Predicated region
        $region29: #{tpu_custom_call.1} parent=27 // pred_check
          %p176 = pneg %p51
        $region30: #{tpu_custom_call.1} parent=27 // pred_check_branch
          %178 = sbr.rel (%p176) target = $region32
        $region31: #{tpu_custom_call.1} parent=27 // pred_region
          %s179 = ssub.s32 1, %s20
          %s180 = smul.u32 %s179, %s21
          %s181 = sadd.s32 %s180, %s20
          %p182 = scmp.lt.s32.totalorder %s181, 1
          %s183 = scalar_select %p182, %s181, 1
          %s184 = smul.addr %s183, 8
          %s185 = smul.addr %s184, 4
          %s186 = scalar_lea.vmem %s0, %s185
          %s187 = ssub.s32 1, %s20
          %s188 = smul.u32 %s187, %s21
          %s189 = sadd.s32 %s188, %s20
        $region32: #{tpu_custom_call.1} parent=27 // pred_fallthru
          _
      $region28: #{tpu_custom_call.1} parent=5 // pred_fallthru
        _
      %p190 = scmp.le.s32.totalorder 1, %s13
      %p191 = scmp.lt.s32.totalorder %s13, 5
      %p192 = pnand %p190, %p191
      %p193 = pneg %p192
      // Predicated region
      $region33: #{tpu_custom_call.1} parent=5 // pred_check
        _
      $region34: #{tpu_custom_call.1} parent=5 // pred_check_branch
        %195 = sbr.rel (%p192) target = $region36
      $region35: #{tpu_custom_call.1} parent=5 // pred_region
        %s196 = ssub.s32 %s13, 1
        %s197 = ssub.s32 1, %s22
        %s198 = smul.u32 %s197, %s23
        %s199 = sadd.s32 %s198, %s22
        %p200 = scmp.lt.s32.totalorder %s199, 1
        %s201 = scalar_select %p200, %s199, 1
        %s202 = smul.addr %s201, 8
        %s203 = smul.addr %s202, 4
        %s204 = scalar_lea.vmem %s0, %s203
        %p205 = pneg %p57
        %p206 = pneg %p54
        %p207 = pneg %p78
        %p208 = pneg %p75
        %p209 = pneg %p99
        %p210 = pneg %p96
        %p211 = pneg %p120
        %p212 = pneg %p117
        %p213 = pneg %p148
        %p214 = pneg %p145
        %s215 = sand.u32 %s135, 1
        %s216 = scalar_lea.sflag [#allocation6], %s215
        %s217 = sand.u32 %s135, 1
        %s218 = smul.addr %s217, 128
        %s219 = scalar_lea.vmem [#allocation5], %s218
        %s220 = ssub.s32 1, %s22
        %s221 = smul.u32 %s220, %s23
        %s222 = sadd.s32 %s221, %s22
        %p223 = scmp.lt.s32.totalorder %s222, 1
        %s224 = scalar_select %p223, %s222, 1
        %s225 = smul.addr %s224, 8
        %s226 = smul.addr %s225, 4
        %s227 = scalar_lea.vmem %s0, %s226
        %s228 = ssub.s32 1, %s22
        %s229 = smul.u32 %s228, %s23
        %s230 = sadd.s32 %s229, %s22
        %s231 = smul.u32 %s22, %s23
        %p233 = scmp.eq.s32.totalorder %s22, 0
        // Predicated region
        $region37: #{tpu_custom_call.1} parent=35 // pred_check
          %p234 = pneg %p233
        $region38: #{tpu_custom_call.1} parent=35 // pred_check_branch
          %236 = sbr.rel (%p234) target = $region40
        $region39: #{tpu_custom_call.1} parent=35 // pred_region
          %v237 = vld [vmem:[%s1] sm:$0xf]
          %v238 = vld [vmem:[%s1 + $0x4] sm:$0xf]
          %v239 = vld [vmem:[%s1 + $0x8] sm:$0xf]
          %v240 = vld [vmem:[%s1 + $0xc] sm:$0xf]
          %v241 = vld [vmem:[%s1 + $0x10] sm:$0xf]
          %v242 = vld [vmem:[%s1 + $0x14] sm:$0xf]
          %v243 = vld [vmem:[%s1 + $0x18] sm:$0xf]
          %v244 = vld [vmem:[%s1 + $0x1c] sm:$0xf]
          %v245 = vld [vmem:[%s227] sm:$0xff]
          %v246 = vld [vmem:[%s227 + $0x8] sm:$0xff]
          %v247 = vld [vmem:[%s227 + $0x10] sm:$0xff]
          %v248 = vld [vmem:[%s227 + $0x18] sm:$0x33]
          %v257 = vunpack.c.l.b16 %v237
          %v258 = vunpack.c.l.b16 %v238
          %v259 = vunpack.c.l.b16 %v239
          %v260 = vunpack.c.l.b16 %v240
          %v261 = vunpack.c.l.b16 %v241
          %v262 = vunpack.c.l.b16 %v242
          %v263 = vunpack.c.l.b16 %v243
          %v264 = vunpack.c.l.b16 %v244
          %v265 = vpack.c.b16 %v258, %v257
          %v266 = vpack.c.b16 %v260, %v259
          %v267 = vpack.c.b16 %v262, %v261
          %v268 = vpack.c.b16 %v264, %v263
          %v273 = vunpack.c.l.b16 %v245
          %v274 = vunpack.c.h.b16 %v245
          %v275 = vunpack.c.l.b16 %v246
          %v276 = vunpack.c.h.b16 %v246
          %v277 = vunpack.c.l.b16 %v247
          %v278 = vunpack.c.h.b16 %v247
          %v279 = vunpack.c.l.b16 %v248
          %v280 = vunpack.c.h.b16 %v248
          %v281 = vpack.c.b16 %v275, %v273
          %v282 = vpack.c.b16 %v276, %v274
          %v283 = vpack.c.b16 %v279, %v277
          %v284 = vpack.c.b16 %v280, %v278
          %vm287 = vcmask 220160
          %v289 = vsel %vm287, %v265, 0
          %v292 = vsel %vm287, %v266, 0
          %v295 = vsel %vm287, %v267, 0
          %v298 = vsel %vm287, %v268, 0
          %vm300 = vcmask 1044480
          %vm301 = vcmask 1045504
          %v302 = vsel %vm300, 4294967295, 65535
          %v303 = vsel %vm301, %v302, 0
          %v305 = vand.u32 %v283, %v303
          %v308 = vand.u32 %v284, %v303
          %310 = vmatprep.subr.bf16.mxu0 %v282
          %311 = vmatpush1.bf16.msra.mxu0 %v281
          %312 = vmatprep.subr.bf16.mxu0 %v308
          %313 = vmatpush1.bf16.msra.mxu0 %v305
          %314 = vmatprep.subr.bf16.mxu0 0
          %315 = vmatpush1.bf16.msra.mxu0 0
          %316 = vmatprep.subr.bf16.mxu0 0
          %317 = vmatpush1.bf16.msra.mxu0 0
          %318 = vmatprep.subr.bf16.mxu0 0
          %319 = vmatpush1.bf16.msra.mxu0 0
          %320 = vmatprep.subr.bf16.mxu0 0
          %321 = vmatpush1.bf16.msra.mxu0 0
          %322 = vmatprep.subr.bf16.mxu0 0
          %323 = vmatpush1.bf16.msra.mxu0 0
          %324 = vmatprep.subr.bf16.mxu0 0
          %325 = vmatpush1.bf16.msra.mxu0 0
          %326 = vmatprep.subr.bf16.mxu0 0
          %327 = vmatpush1.bf16.msra.mxu0 0
          %328 = vmatprep.subr.bf16.mxu0 0
          %329 = vmatpush1.bf16.msra.mxu0 0
          %330 = vmatprep.subr.bf16.mxu0 0
          %331 = vmatpush1.bf16.msra.mxu0 0
          %332 = vmatprep.subr.bf16.mxu0 0
          %333 = vmatpush1.bf16.msra.mxu0 0
          %334 = vmatprep.subr.bf16.mxu0 0
          %335 = vmatpush1.bf16.msra.mxu0 0
          %336 = vmatprep.subr.bf16.mxu0 0
          %337 = vmatpush1.bf16.msra.mxu0 0
          %338 = vmatprep.subr.bf16.mxu0 0
          %339 = vmatpush1.bf16.msra.mxu0 0
          %340 = vmatprep.subr.bf16.mxu0 0
          %341 = vmatpush1.bf16.msra.mxu0 0
          %342 = vmatprep.mubr.bf16.mxu0 0
          %343 = vmatmul.mubr.bf16.gmra.mrb[0].mxu0 %v289
          %v344 = vpop.f32.mrb[0].mxu0
          %v345 = vadd.f32 0.0, %v344
          %v346 = vpop.f32.mrb[0].mxu0
          %v347 = vadd.f32 0.0, %v346
          %v348 = vpop.f32.mrb[0].mxu0
          %v349 = vadd.f32 0.0, %v348
          %v350 = vpop.f32.mrb[0].mxu0
          %v351 = vadd.f32 0.0, %v350
          %352 = vmatprep.mubr.bf16.mxu0 0
          %353 = vmatmul.mubr.bf16.gmra.mrb[0].mxu0 %v292
          %v354 = vpop.f32.mrb[0].mxu0
          %v355 = vadd.f32 0.0, %v354
          %v356 = vpop.f32.mrb[0].mxu0
          %v357 = vadd.f32 0.0, %v356
          %v358 = vpop.f32.mrb[0].mxu0
          %v359 = vadd.f32 0.0, %v358
          %v360 = vpop.f32.mrb[0].mxu0
          %v361 = vadd.f32 0.0, %v360
          %362 = vmatprep.mubr.bf16.mxu0 0
          %363 = vmatmul.mubr.bf16.gmra.mrb[0].mxu0 %v295
          %v364 = vpop.f32.mrb[0].mxu0
          %v365 = vadd.f32 0.0, %v364
          %v366 = vpop.f32.mrb[0].mxu0
          %v367 = vadd.f32 0.0, %v366
          %v368 = vpop.f32.mrb[0].mxu0
          %v369 = vadd.f32 0.0, %v368
          %v370 = vpop.f32.mrb[0].mxu0
          %v371 = vadd.f32 0.0, %v370
          %372 = vmatprep.mubr.bf16.mxu0 0
          %373 = vmatmul.mubr.bf16.gmra.mrb[0].mxu0 %v298
          %v374 = vpop.f32.mrb[0].mxu0
          %v375 = vadd.f32 0.0, %v374
          %v376 = vpop.f32.mrb[0].mxu0
          %v377 = vadd.f32 0.0, %v376
          %v378 = vpop.f32.mrb[0].mxu0
          %v379 = vadd.f32 0.0, %v378
          %v380 = vpop.f32.mrb[0].mxu0
          %v381 = vadd.f32 0.0, %v380
          %382 = vdwg.mxu0
          %s383 = smul.u32 %s23, 16
          %s384 = smul.addr %s383, 8
          %s385 = scalar_lea.vmem [#allocation2], %s384
          %386 = vst [vmem:[%s385] sm:$0xff] %v345
          %387 = vst [vmem:[%s385 + $0x8] sm:$0xff] %v347
          %388 = vst [vmem:[%s385 + $0x10] sm:$0xff] %v349
          %389 = vst [vmem:[%s385 + $0x18] sm:$0xff] %v351
          %390 = vst [vmem:[%s385 + $0x20] sm:$0xff] %v355
          %391 = vst [vmem:[%s385 + $0x28] sm:$0xff] %v357
          %392 = vst [vmem:[%s385 + $0x30] sm:$0xff] %v359
          %393 = vst [vmem:[%s385 + $0x38] sm:$0xff] %v361
          %394 = vst [vmem:[%s385 + $0x40] sm:$0xff] %v365
          %395 = vst [vmem:[%s385 + $0x48] sm:$0xff] %v367
          %396 = vst [vmem:[%s385 + $0x50] sm:$0xff] %v369
          %397 = vst [vmem:[%s385 + $0x58] sm:$0xff] %v371
          %398 = vst [vmem:[%s385 + $0x60] sm:$0xff] %v375
          %399 = vst [vmem:[%s385 + $0x68] sm:$0xff] %v377
          %400 = vst [vmem:[%s385 + $0x70] sm:$0xff] %v379
          %401 = vst [vmem:[%s385 + $0x78] sm:$0xff] %v381
          %p402 = scmp.eq.s32.totalorder %s23, 1
          // Predicated region
          $region41: #{tpu_custom_call.1} parent=39 // pred_check
            %p403 = pneg %p402
          $region42: #{tpu_custom_call.1} parent=39 // pred_check_branch
            %405 = sbr.rel (%p403) target = $region44
          $region43: #{tpu_custom_call.1} parent=39 // pred_region
            %v406 = vld [vmem:[#allocation2] sm:$0xff]
            %v407 = vld [vmem:[#allocation2 + $0x8] sm:$0xff]
            %v408 = vld [vmem:[#allocation2 + $0x10] sm:$0xff]
            %v409 = vld [vmem:[#allocation2 + $0x18] sm:$0xff]
            %v410 = vld [vmem:[#allocation2 + $0x20] sm:$0xff]
            %v411 = vld [vmem:[#allocation2 + $0x28] sm:$0xff]
            %v412 = vld [vmem:[#allocation2 + $0x30] sm:$0xff]
            %v413 = vld [vmem:[#allocation2 + $0x38] sm:$0xff]
            %v414 = vld [vmem:[#allocation2 + $0x40] sm:$0xff]
            %v415 = vld [vmem:[#allocation2 + $0x48] sm:$0xff]
            %v416 = vld [vmem:[#allocation2 + $0x50] sm:$0xff]
            %v417 = vld [vmem:[#allocation2 + $0x58] sm:$0xff]
            %v418 = vld [vmem:[#allocation2 + $0x60] sm:$0xff]
            %v419 = vld [vmem:[#allocation2 + $0x68] sm:$0xff]
            %v420 = vld [vmem:[#allocation2 + $0x70] sm:$0xff]
            %v421 = vld [vmem:[#allocation2 + $0x78] sm:$0xff]
            %v422 = vld [vmem:[#allocation2 + $0x80] sm:$0xff]
            %v423 = vld [vmem:[#allocation2 + $0x88] sm:$0xff]
            %v424 = vld [vmem:[#allocation2 + $0x90] sm:$0xff]
            %v425 = vld [vmem:[#allocation2 + $0x98] sm:$0xff]
            %v426 = vld [vmem:[#allocation2 + $0xa0] sm:$0xff]
            %v427 = vld [vmem:[#allocation2 + $0xa8] sm:$0xff]
            %v428 = vld [vmem:[#allocation2 + $0xb0] sm:$0xff]
            %v429 = vld [vmem:[#allocation2 + $0xb8] sm:$0xff]
            %v430 = vld [vmem:[#allocation2 + $0xc0] sm:$0xff]
            %v431 = vld [vmem:[#allocation2 + $0xc8] sm:$0xff]
            %v432 = vld [vmem:[#allocation2 + $0xd0] sm:$0xff]
            %v433 = vld [vmem:[#allocation2 + $0xd8] sm:$0xff]
            %v434 = vld [vmem:[#allocation2 + $0xe0] sm:$0xff]
            %v435 = vld [vmem:[#allocation2 + $0xe8] sm:$0xff]
            %v436 = vld [vmem:[#allocation2 + $0xf0] sm:$0xff]
            %v437 = vld [vmem:[#allocation2 + $0xf8] sm:$0xff]
            %v438 = vadd.f32 %v406, %v422
            %v439 = vadd.f32 %v407, %v423
            %v440 = vadd.f32 %v408, %v424
            %v441 = vadd.f32 %v409, %v425
            %v442 = vadd.f32 %v410, %v426
            %v443 = vadd.f32 %v411, %v427
            %v444 = vadd.f32 %v412, %v428
            %v445 = vadd.f32 %v413, %v429
            %v446 = vadd.f32 %v414, %v430
            %v447 = vadd.f32 %v415, %v431
            %v448 = vadd.f32 %v416, %v432
            %v449 = vadd.f32 %v417, %v433
            %v450 = vadd.f32 %v418, %v434
            %v451 = vadd.f32 %v419, %v435
            %v452 = vadd.f32 %v420, %v436
            %v453 = vadd.f32 %v421, %v437
            %v454 = vadd.f32 %v438, %v439
            %455 = vadd.xlane.f32.xlu0 %v454
            %v456 = vpop.xlane.xlu0 %455
            %v457 = vadd.f32 %v440, %v441
            %458 = vadd.xlane.f32.xlu0 %v457
            %v459 = vpop.xlane.xlu0 %458
            %v460 = vadd.f32 %v442, %v443
            %461 = vadd.xlane.f32.xlu0 %v460
            %v462 = vpop.xlane.xlu0 %461
            %v463 = vadd.f32 %v444, %v445
            %464 = vadd.xlane.f32.xlu0 %v463
            %v465 = vpop.xlane.xlu0 %464
            %v466 = vadd.f32 %v446, %v447
            %467 = vadd.xlane.f32.xlu0 %v466
            %v468 = vpop.xlane.xlu0 %467
            %v469 = vadd.f32 %v448, %v449
            %470 = vadd.xlane.f32.xlu0 %v469
            %v471 = vpop.xlane.xlu0 %470
            %v472 = vadd.f32 %v450, %v451
            %473 = vadd.xlane.f32.xlu0 %v472
            %v474 = vpop.xlane.xlu0 %473
            %v475 = vadd.f32 %v452, %v453
            %476 = vadd.xlane.f32.xlu0 %v475
            %v477 = vpop.xlane.xlu0 %476
            %v478 = vrcp.pop 512.0
            %v479 = vmul.f32 %v456, %v478
            %v480 = vmul.f32 %v459, %v478
            %v481 = vmul.f32 %v462, %v478
            %v482 = vmul.f32 %v465, %v478
            %v483 = vmul.f32 %v468, %v478
            %v484 = vmul.f32 %v471, %v478
            %v485 = vmul.f32 %v474, %v478
            %v486 = vmul.f32 %v477, %v478
            %v487 = vsub.f32 %v406, %v479
            %v488 = vsub.f32 %v407, %v479
            %v489 = vsub.f32 %v408, %v480
            %v490 = vsub.f32 %v409, %v480
            %v491 = vsub.f32 %v410, %v481
            %v492 = vsub.f32 %v411, %v481
            %v493 = vsub.f32 %v412, %v482
            %v494 = vsub.f32 %v413, %v482
            %v495 = vsub.f32 %v414, %v483
            %v496 = vsub.f32 %v415, %v483
            %v497 = vsub.f32 %v416, %v484
            %v498 = vsub.f32 %v417, %v484
            %v499 = vsub.f32 %v418, %v485
            %v500 = vsub.f32 %v419, %v485
            %v501 = vsub.f32 %v420, %v486
            %v502 = vsub.f32 %v421, %v486
            %v503 = vsub.f32 %v422, %v479
            %v504 = vsub.f32 %v423, %v479
            %v505 = vsub.f32 %v424, %v480
            %v506 = vsub.f32 %v425, %v480
            %v507 = vsub.f32 %v426, %v481
            %v508 = vsub.f32 %v427, %v481
            %v509 = vsub.f32 %v428, %v482
            %v510 = vsub.f32 %v429, %v482
            %v511 = vsub.f32 %v430, %v483
            %v512 = vsub.f32 %v431, %v483
            %v513 = vsub.f32 %v432, %v484
            %v514 = vsub.f32 %v433, %v484
            %v515 = vsub.f32 %v434, %v485
            %v516 = vsub.f32 %v435, %v485
            %v517 = vsub.f32 %v436, %v486
            %v518 = vsub.f32 %v437, %v486
            %v519 = vmul.f32 %v487, %v487
            %v520 = vmul.f32 %v488, %v488
            %v521 = vmul.f32 %v489, %v489
            %v522 = vmul.f32 %v490, %v490
            %v523 = vmul.f32 %v491, %v491
            %v524 = vmul.f32 %v492, %v492
            %v525 = vmul.f32 %v493, %v493
            %v526 = vmul.f32 %v494, %v494
            %v527 = vmul.f32 %v495, %v495
            %v528 = vmul.f32 %v496, %v496
            %v529 = vmul.f32 %v497, %v497
            %v530 = vmul.f32 %v498, %v498
            %v531 = vmul.f32 %v499, %v499
            %v532 = vmul.f32 %v500, %v500
            %v533 = vmul.f32 %v501, %v501
            %v534 = vmul.f32 %v502, %v502
            %v535 = vmul.f32 %v503, %v503
            %v536 = vmul.f32 %v504, %v504
            %v537 = vmul.f32 %v505, %v505
            %v538 = vmul.f32 %v506, %v506
            %v539 = vmul.f32 %v507, %v507
            %v540 = vmul.f32 %v508, %v508
            %v541 = vmul.f32 %v509, %v509
            %v542 = vmul.f32 %v510, %v510
            %v543 = vmul.f32 %v511, %v511
            %v544 = vmul.f32 %v512, %v512
            %v545 = vmul.f32 %v513, %v513
            %v546 = vmul.f32 %v514, %v514
            %v547 = vmul.f32 %v515, %v515
            %v548 = vmul.f32 %v516, %v516
            %v549 = vmul.f32 %v517, %v517
            %v550 = vmul.f32 %v518, %v518
            %v551 = vadd.f32 %v519, %v535
            %v552 = vadd.f32 %v520, %v536
            %v553 = vadd.f32 %v521, %v537
            %v554 = vadd.f32 %v522, %v538
            %v555 = vadd.f32 %v523, %v539
            %v556 = vadd.f32 %v524, %v540
            %v557 = vadd.f32 %v525, %v541
            %v558 = vadd.f32 %v526, %v542
            %v559 = vadd.f32 %v527, %v543
            %v560 = vadd.f32 %v528, %v544
            %v561 = vadd.f32 %v529, %v545
            %v562 = vadd.f32 %v530, %v546
            %v563 = vadd.f32 %v531, %v547
            %v564 = vadd.f32 %v532, %v548
            %v565 = vadd.f32 %v533, %v549
            %v566 = vadd.f32 %v534, %v550
            %v567 = vadd.f32 %v551, %v552
            %568 = vadd.xlane.f32.xlu0 %v567
            %v569 = vpop.xlane.xlu0 %568
            %v570 = vadd.f32 %v553, %v554
            %571 = vadd.xlane.f32.xlu0 %v570
            %v572 = vpop.xlane.xlu0 %571
            %v573 = vadd.f32 %v555, %v556
            %574 = vadd.xlane.f32.xlu0 %v573
            %v575 = vpop.xlane.xlu0 %574
            %v576 = vadd.f32 %v557, %v558
            %577 = vadd.xlane.f32.xlu0 %v576
            %v578 = vpop.xlane.xlu0 %577
            %v579 = vadd.f32 %v559, %v560
            %580 = vadd.xlane.f32.xlu0 %v579
            %v581 = vpop.xlane.xlu0 %580
            %v582 = vadd.f32 %v561, %v562
            %583 = vadd.xlane.f32.xlu0 %v582
            %v584 = vpop.xlane.xlu0 %583
            %v585 = vadd.f32 %v563, %v564
            %586 = vadd.xlane.f32.xlu0 %v585
            %v587 = vpop.xlane.xlu0 %586
            %v588 = vadd.f32 %v565, %v566
            %589 = vadd.xlane.f32.xlu0 %v588
            %v590 = vpop.xlane.xlu0 %589
            %v591 = vmul.f32 %v569, %v478
            %v592 = vmul.f32 %v572, %v478
            %v593 = vmul.f32 %v575, %v478
            %v594 = vmul.f32 %v578, %v478
            %v595 = vmul.f32 %v581, %v478
            %v596 = vmul.f32 %v584, %v478
            %v597 = vmul.f32 %v587, %v478
            %v598 = vmul.f32 %v590, %v478
            %v599 = vadd.f32 %v591, 1e-05
            %v600 = vadd.f32 %v592, 1e-05
            %v601 = vadd.f32 %v593, 1e-05
            %v602 = vadd.f32 %v594, 1e-05
            %v603 = vadd.f32 %v595, 1e-05
            %v604 = vadd.f32 %v596, 1e-05
            %v605 = vadd.f32 %v597, 1e-05
            %v606 = vadd.f32 %v598, 1e-05
            %v607 = vrsqrt.pop %v599
            %v608 = vrsqrt.pop %v600
            %v609 = vrsqrt.pop %v601
            %v610 = vrsqrt.pop %v602
            %v611 = vrsqrt.pop %v603
            %v612 = vrsqrt.pop %v604
            %v613 = vrsqrt.pop %v605
            %v614 = vrsqrt.pop %v606
            %v615 = vld [vmem:[%s2] sm:$0xff]
            %v616 = vld [vmem:[%s2 + $0x8] sm:$0xff]
            %v617 = vld [vmem:[%s2 + $0x10] sm:$0xff]
            %v618 = vld [vmem:[%s2 + $0x18] sm:$0xff]
            %v619 = vld [vmem:[%s2 + $0x20] sm:$0xff]
            %v620 = vld [vmem:[%s2 + $0x28] sm:$0xff]
            %v621 = vld [vmem:[%s2 + $0x30] sm:$0xff]
            %v622 = vld [vmem:[%s2 + $0x38] sm:$0xff]
            %v623 = vmul.f32 %v615, %v607
            %v624 = vmul.f32 %v616, %v608
            %v625 = vmul.f32 %v617, %v609
            %v626 = vmul.f32 %v618, %v610
            %v627 = vmul.f32 %v619, %v611
            %v628 = vmul.f32 %v620, %v612
            %v629 = vmul.f32 %v621, %v613
            %v630 = vmul.f32 %v622, %v614
            %vm631 = vcmask 7168
            %632 = vst.msk [vmem:[#allocation3] sm:$0xff] %vm631, %v623
            %633 = vst.msk [vmem:[#allocation3 + $0x8] sm:$0xff] %vm631, %v624
            %634 = vst.msk [vmem:[#allocation3 + $0x10] sm:$0xff] %vm631, %v625
            %635 = vst.msk [vmem:[#allocation3 + $0x18] sm:$0xff] %vm631, %v626
            %636 = vst.msk [vmem:[#allocation3 + $0x20] sm:$0xff] %vm631, %v627
            %637 = vst.msk [vmem:[#allocation3 + $0x28] sm:$0xff] %vm631, %v628
            %638 = vst.msk [vmem:[#allocation3 + $0x30] sm:$0xff] %vm631, %v629
            %639 = vst.msk [vmem:[#allocation3 + $0x38] sm:$0xff] %vm631, %v630
            %v640 = vld [vmem:[%s3] sm:$0xff]
            %v641 = vld [vmem:[%s3 + $0x8] sm:$0xff]
            %v642 = vld [vmem:[%s3 + $0x10] sm:$0xff]
            %v643 = vld [vmem:[%s3 + $0x18] sm:$0xff]
            %v644 = vld [vmem:[%s3 + $0x20] sm:$0xff]
            %v645 = vld [vmem:[%s3 + $0x28] sm:$0xff]
            %v646 = vld [vmem:[%s3 + $0x30] sm:$0xff]
            %v647 = vld [vmem:[%s3 + $0x38] sm:$0xff]
            %v648 = vmul.f32 %v479, %v623
            %v649 = vmul.f32 %v480, %v624
            %v650 = vmul.f32 %v481, %v625
            %v651 = vmul.f32 %v482, %v626
            %v652 = vmul.f32 %v483, %v627
            %v653 = vmul.f32 %v484, %v628
            %v654 = vmul.f32 %v485, %v629
            %v655 = vmul.f32 %v486, %v630
            %v656 = vsub.f32 %v640, %v648
            %v657 = vsub.f32 %v641, %v649
            %v658 = vsub.f32 %v642, %v650
            %v659 = vsub.f32 %v643, %v651
            %v660 = vsub.f32 %v644, %v652
            %v661 = vsub.f32 %v645, %v653
            %v662 = vsub.f32 %v646, %v654
            %v663 = vsub.f32 %v647, %v655
            %664 = vst.msk [vmem:[#allocation4] sm:$0xff] %vm631, %v656
            %665 = vst.msk [vmem:[#allocation4 + $0x8] sm:$0xff] %vm631, %v657
            %666 = vst.msk [vmem:[#allocation4 + $0x10] sm:$0xff] %vm631, %v658
            %667 = vst.msk [vmem:[#allocation4 + $0x18] sm:$0xff] %vm631, %v659
            %668 = vst.msk [vmem:[#allocation4 + $0x20] sm:$0xff] %vm631, %v660
            %669 = vst.msk [vmem:[#allocation4 + $0x28] sm:$0xff] %vm631, %v661
            %670 = vst.msk [vmem:[#allocation4 + $0x30] sm:$0xff] %vm631, %v662
            %671 = vst.msk [vmem:[#allocation4 + $0x38] sm:$0xff] %vm631, %v663
          $region44: #{tpu_custom_call.1} parent=39 // pred_fallthru
            _
        $region40: #{tpu_custom_call.1} parent=35 // pred_fallthru
          _
        %p672 = scmp.eq.s32.totalorder %s22, 1
        // Predicated region
        $region45: #{tpu_custom_call.1} parent=35 // pred_check
          %p673 = pneg %p672
        $region46: #{tpu_custom_call.1} parent=35 // pred_check_branch
          %675 = sbr.rel (%p673) target = $region48
        $region47: #{tpu_custom_call.1} parent=35 // pred_region
          %s676 = smul.u32 %s23, 16
          %s677 = smul.addr %s676, 8
          %s678 = scalar_lea.vmem [#allocation2], %s677
          %v679 = vld [vmem:[%s678] sm:$0xff]
          %v680 = vld [vmem:[%s678 + $0x8] sm:$0xff]
          %v681 = vld [vmem:[%s678 + $0x10] sm:$0xff]
          %v682 = vld [vmem:[%s678 + $0x18] sm:$0xff]
          %v683 = vld [vmem:[%s678 + $0x20] sm:$0xff]
          %v684 = vld [vmem:[%s678 + $0x28] sm:$0xff]
          %v685 = vld [vmem:[%s678 + $0x30] sm:$0xff]
          %v686 = vld [vmem:[%s678 + $0x38] sm:$0xff]
          %v687 = vld [vmem:[%s678 + $0x40] sm:$0xff]
          %v688 = vld [vmem:[%s678 + $0x48] sm:$0xff]
          %v689 = vld [vmem:[%s678 + $0x50] sm:$0xff]
          %v690 = vld [vmem:[%s678 + $0x58] sm:$0xff]
          %v691 = vld [vmem:[%s678 + $0x60] sm:$0xff]
          %v692 = vld [vmem:[%s678 + $0x68] sm:$0xff]
          %v693 = vld [vmem:[%s678 + $0x70] sm:$0xff]
          %v694 = vld [vmem:[%s678 + $0x78] sm:$0xff]
          %v695 = vld [vmem:[#allocation3] sm:$0xff]
          %v696 = vld [vmem:[#allocation3 + $0x8] sm:$0xff]
          %v697 = vld [vmem:[#allocation3 + $0x10] sm:$0xff]
          %v698 = vld [vmem:[#allocation3 + $0x18] sm:$0xff]
          %v699 = vld [vmem:[#allocation3 + $0x20] sm:$0xff]
          %v700 = vld [vmem:[#allocation3 + $0x28] sm:$0xff]
          %v701 = vld [vmem:[#allocation3 + $0x30] sm:$0xff]
          %v702 = vld [vmem:[#allocation3 + $0x38] sm:$0xff]
          %704 = vset.pattern.permute.xlu0 0
          %705 = vperm.xlu0 %704, %v695
          %v706 = vpop.permute.xlu0 %705
          %709 = vset.pattern.permute.xlu0 0
          %710 = vperm.xlu0 %709, %v696
          %v711 = vpop.permute.xlu0 %710
          %714 = vset.pattern.permute.xlu0 0
          %715 = vperm.xlu0 %714, %v697
          %v716 = vpop.permute.xlu0 %715
          %719 = vset.pattern.permute.xlu0 0
          %720 = vperm.xlu0 %719, %v698
          %v721 = vpop.permute.xlu0 %720
          %724 = vset.pattern.permute.xlu0 0
          %725 = vperm.xlu0 %724, %v699
          %v726 = vpop.permute.xlu0 %725
          %729 = vset.pattern.permute.xlu0 0
          %730 = vperm.xlu0 %729, %v700
          %v731 = vpop.permute.xlu0 %730
          %734 = vset.pattern.permute.xlu0 0
          %735 = vperm.xlu0 %734, %v701
          %v736 = vpop.permute.xlu0 %735
          %739 = vset.pattern.permute.xlu0 0
          %740 = vperm.xlu0 %739, %v702
          %v741 = vpop.permute.xlu0 %740
          %v743 = vmul.f32 %v679, %v706
          %v744 = vmul.f32 %v680, %v706
          %v745 = vmul.f32 %v681, %v711
          %v746 = vmul.f32 %v682, %v711
          %v747 = vmul.f32 %v683, %v716
          %v748 = vmul.f32 %v684, %v716
          %v749 = vmul.f32 %v685, %v721
          %v750 = vmul.f32 %v686, %v721
          %v751 = vmul.f32 %v687, %v726
          %v752 = vmul.f32 %v688, %v726
          %v753 = vmul.f32 %v689, %v731
          %v754 = vmul.f32 %v690, %v731
          %v755 = vmul.f32 %v691, %v736
          %v756 = vmul.f32 %v692, %v736
          %v757 = vmul.f32 %v693, %v741
          %v758 = vmul.f32 %v694, %v741
          %v759 = vld [vmem:[#allocation4] sm:$0xff]
          %v760 = vld [vmem:[#allocation4 + $0x8] sm:$0xff]
          %v761 = vld [vmem:[#allocation4 + $0x10] sm:$0xff]
          %v762 = vld [vmem:[#allocation4 + $0x18] sm:$0xff]
          %v763 = vld [vmem:[#allocation4 + $0x20] sm:$0xff]
          %v764 = vld [vmem:[#allocation4 + $0x28] sm:$0xff]
          %v765 = vld [vmem:[#allocation4 + $0x30] sm:$0xff]
          %v766 = vld [vmem:[#allocation4 + $0x38] sm:$0xff]
          %768 = vset.pattern.permute.xlu0 0
          %769 = vperm.xlu0 %768, %v759
          %v770 = vpop.permute.xlu0 %769
          %773 = vset.pattern.permute.xlu0 0
          %774 = vperm.xlu0 %773, %v760
          %v775 = vpop.permute.xlu0 %774
          %778 = vset.pattern.permute.xlu0 0
          %779 = vperm.xlu0 %778, %v761
          %v780 = vpop.permute.xlu0 %779
          %783 = vset.pattern.permute.xlu0 0
          %784 = vperm.xlu0 %783, %v762
          %v785 = vpop.permute.xlu0 %784
          %788 = vset.pattern.permute.xlu0 0
          %789 = vperm.xlu0 %788, %v763
          %v790 = vpop.permute.xlu0 %789
          %793 = vset.pattern.permute.xlu0 0
          %794 = vperm.xlu0 %793, %v764
          %v795 = vpop.permute.xlu0 %794
          %798 = vset.pattern.permute.xlu0 0
          %799 = vperm.xlu0 %798, %v765
          %v800 = vpop.permute.xlu0 %799
          %803 = vset.pattern.permute.xlu0 0
          %804 = vperm.xlu0 %803, %v766
          %v805 = vpop.permute.xlu0 %804
          %v807 = vadd.f32 %v743, %v770
          %v808 = vadd.f32 %v744, %v770
          %v809 = vadd.f32 %v745, %v775
          %v810 = vadd.f32 %v746, %v775
          %v811 = vadd.f32 %v747, %v780
          %v812 = vadd.f32 %v748, %v780
          %v813 = vadd.f32 %v749, %v785
          %v814 = vadd.f32 %v750, %v785
          %v815 = vadd.f32 %v751, %v790
          %v816 = vadd.f32 %v752, %v790
          %v817 = vadd.f32 %v753, %v795
          %v818 = vadd.f32 %v754, %v795
          %v819 = vadd.f32 %v755, %v800
          %v820 = vadd.f32 %v756, %v800
          %v821 = vadd.f32 %v757, %v805
          %v822 = vadd.f32 %v758, %v805
          %v823 = vmax.f32 %v807, 0.0
          %v824 = vmax.f32 %v808, 0.0
          %v825 = vmax.f32 %v809, 0.0
          %v826 = vmax.f32 %v810, 0.0
          %v827 = vmax.f32 %v811, 0.0
          %v828 = vmax.f32 %v812, 0.0
          %v829 = vmax.f32 %v813, 0.0
          %v830 = vmax.f32 %v814, 0.0
          %v831 = vmax.f32 %v815, 0.0
          %v832 = vmax.f32 %v816, 0.0
          %v833 = vmax.f32 %v817, 0.0
          %v834 = vmax.f32 %v818, 0.0
          %v835 = vmax.f32 %v819, 0.0
          %v836 = vmax.f32 %v820, 0.0
          %v837 = vmax.f32 %v821, 0.0
          %v838 = vmax.f32 %v822, 0.0
          %839 = vst [vmem:[%s219] sm:$0xff] %v823
          %840 = vst [vmem:[%s219 + $0x8] sm:$0xff] %v824
          %841 = vst [vmem:[%s219 + $0x10] sm:$0xff] %v825
          %842 = vst [vmem:[%s219 + $0x18] sm:$0xff] %v826
          %843 = vst [vmem:[%s219 + $0x20] sm:$0xff] %v827
          %844 = vst [vmem:[%s219 + $0x28] sm:$0xff] %v828
          %845 = vst [vmem:[%s219 + $0x30] sm:$0xff] %v829
          %846 = vst [vmem:[%s219 + $0x38] sm:$0xff] %v830
          %847 = vst [vmem:[%s219 + $0x40] sm:$0xff] %v831
          %848 = vst [vmem:[%s219 + $0x48] sm:$0xff] %v832
          %849 = vst [vmem:[%s219 + $0x50] sm:$0xff] %v833
          %850 = vst [vmem:[%s219 + $0x58] sm:$0xff] %v834
          %851 = vst [vmem:[%s219 + $0x60] sm:$0xff] %v835
          %852 = vst [vmem:[%s219 + $0x68] sm:$0xff] %v836
          %853 = vst [vmem:[%s219 + $0x70] sm:$0xff] %v837
          %854 = vst [vmem:[%s219 + $0x78] sm:$0xff] %v838
        $region48: #{tpu_custom_call.1} parent=35 // pred_fallthru
          _
        %s855 = sand.u32 %s135, 1
        %s856 = scalar_lea.sflag [#allocation6], %s855
        %s857 = sand.u32 %s135, 1
        %s858 = smul.addr %s857, 128
        %s859 = scalar_lea.vmem [#allocation5], %s858
        // Predicated region
        $region49: #{tpu_custom_call.1} parent=35 // pred_check
          %p860 = pneg %p145
        $region50: #{tpu_custom_call.1} parent=35 // pred_check_branch
          %862 = sbr.rel (%p860) target = $region52
        $region51: #{tpu_custom_call.1} parent=35 // pred_region
          %s863 = smul.u32 %s22, %s23
          %s865 = ssub.s32 2048, 2048
          %866 = vsyncadd %s856, %s865
          %s867 = smul.addr %s863, 16
          %s868 = smul.addr %s867, 128
          %s869 = scalar_lea.hbm %s4, %s868
          %s870 = sshll.u32 %s859, 4
          %s871 = int_to_ptr.vmem [resolvable:$true] %s870
          %876 = dma.vmem_to_hbm [thread:$0]  %s871, 2048, %s869, %s856, 256, 256, 16
        $region52: #{tpu_custom_call.1} parent=35 // pred_fallthru
          _
      $region36: #{tpu_custom_call.1} parent=5 // pred_fallthru
        _
      %p877 = scmp.le.s32.totalorder 2, %s13
      // Predicated region
      $region53: #{tpu_custom_call.1} parent=5 // pred_check
        %p878 = pneg %p877
      $region54: #{tpu_custom_call.1} parent=5 // pred_check_branch
        %880 = sbr.rel (%p878) target = $region56
      $region55: #{tpu_custom_call.1} parent=5 // pred_region
        %s881 = ssub.s32 %s13, 2
        // Predicated region
        $region57: #{tpu_custom_call.1} parent=55 // pred_check
          %p882 = pneg %p151
        $region58: #{tpu_custom_call.1} parent=55 // pred_check_branch
          %884 = sbr.rel (%p882) target = $region60
        $region59: #{tpu_custom_call.1} parent=55 // pred_region
          %s885 = sand.u32 %s136, 1
          %s886 = scalar_lea.sflag [#allocation6], %s885
          %s887 = sand.u32 %s136, 1
          %s888 = smul.addr %s887, 128
          %s889 = scalar_lea.vmem [#allocation5], %s888
          %890 = dma.done %s886, 2048
        $region60: #{tpu_custom_call.1} parent=55 // pred_fallthru
          _
      $region56: #{tpu_custom_call.1} parent=5 // pred_fallthru
        _
    $region6: #{tpu_custom_call.1} parent=1 // loop_footer
      %s17 = sadd.s32 1, %s13
    $region7: #{tpu_custom_call.1} parent=1 // loop_footer_branch
      %12 = sbr.rel target = $region3
    $region8: #{tpu_custom_call.1} parent=1 // loop_exit
      _
    %891 = vsyncpa [#allocation6], 1
    %s892 = scalar_lea.sflag [#allocation6], 1
    %893 = vsyncpa %s892, 1

</llo_original>
